<compile_context>
chip_gen: v5e
topology: v5e:2x2
jax: 0.10.0
libtpu: 0.0.40
codegen_flags: <defaults>
</compile_context>

<pallas_src>
import functools

import jax
import jax.numpy as jnp
from jax.experimental import pallas as pl
from jax.experimental.pallas import tpu as pltpu


# ----------------------------------------------------------------------------
# Helpers
# ----------------------------------------------------------------------------

def _row_tile(m, max_rows=512):
    """Largest row tile <= max_rows that is a multiple of 8 and divides m."""
    if m <= max_rows:
        return m
    for t in range(max_rows, 7, -1):
        if m % t == 0 and t % 8 == 0:
            return t
    return m


def _chunk(total, max_chunk):
    """Largest divisor of `total` <= max_chunk, preferring lane multiples."""
    if total <= max_chunk:
        return total
    for c in range(max_chunk, 0, -1):
        if total % c == 0 and c % 128 == 0:
            return c
    for c in range(max_chunk, 0, -1):
        if total % c == 0:
            return c
    return total


def _vmem_limit_bytes():
    """Explicit scoped-VMEM limit: ~cap-8MiB, capped at 100 MiB (v7x-safe)."""
    cap = 64 << 20
    try:
        info = pltpu.get_tpu_info()
        cap = int(getattr(info, "vmem_capacity_bytes", cap))
    except Exception:
        pass
    return max(32 << 20, min(cap - (8 << 20), 100 << 20))


def tubelet_patches(x, ts, p):
    """[B, C, T, H, W] -> [B, N, C*ts*p*p], matching Conv3d(kernel=stride).

    Patch order along N is (t', h', w'); features are ordered (C, dt, dh, dw)
    like the Conv3d weight layout.
    """
    B, C, T, H, W = x.shape
    x = x.reshape(B, C, T // ts, ts, H // p, p, W // p, p)
    x = x.transpose(0, 2, 4, 6, 1, 3, 5, 7)      # B, T', H', W', C, ts, p, p
    return x.reshape(B, (T // ts) * (H // p) * (W // p), C * ts * p * p)


# ----------------------------------------------------------------------------
# Pallas kernels
# ----------------------------------------------------------------------------

def _embed_fuse_kernel(rgb_ref, dep_ref, wr_ref, br_ref, wd_ref, bd_ref,
                       mask_ref, tok_ref, pos_ref, o_ref):
    """Tubelet proj (both modalities) + fuse + mask token + pos embed.

    Grid is (B, N//tm); per-step blocks:
      rgb: (1,tm,Kr) bf16   dep: (1,tm,Kd) bf16   wr/wd: bf16 weights
      mask: (1,tm,1) f32    tok: (1,E) f32        pos: (tm,E) f32
      out:  (1,tm,E) bf16
    """
    r = jnp.dot(rgb_ref[0], wr_ref[...],
                preferred_element_type=jnp.float32) + br_ref[...]
    d = jnp.dot(dep_ref[0], wd_ref[...],
                preferred_element_type=jnp.float32) + bd_ref[...]
    fused = r + d
    out = jnp.where(mask_ref[0] > 0.5, tok_ref[...], fused) + pos_ref[...]
    o_ref[0] = out.astype(o_ref.dtype)


def _layer_norm(v, w, b, eps=1e-6):
    mu = jnp.mean(v, axis=-1, keepdims=True)
    var = jnp.mean(jnp.square(v - mu), axis=-1, keepdims=True)
    return (v - mu) * jax.lax.rsqrt(var + eps) * w + b


def _blocks_kernel(x_ref, wqkv_ref, wo_ref, w1_ref, w2_ref, sp_ref,
                   fnw_ref, fnb_ref, o_ref,
                   *, num_heads, hidden, apply_final_norm, kv_chunk, mlp_chunk):
    """A full stack of pre-norm ViT blocks for one (branch, batch) pair.

    Grid = (G, B, L); the layer axis is 'arbitrary'.  The residual activation
    is carried in the output block itself (its index is constant over L, so it
    stays resident in VMEM; no scratch buffer, no HBM round trips).
    """
    layer = pl.program_id(2)
    last = pl.num_programs(2) - 1
    bf16 = jnp.bfloat16

    @pl.when(layer == 0)
    def _():
        o_ref[0, 0] = x_ref[0].astype(jnp.float32)

    x = o_ref[0, 0]                       # (N, D) f32 residual carry
    N, D = x.shape
    H = num_heads
    hd = D // H
    scale = hd ** -0.5

    # Packed per-layer small params (single fat DMA per layer):
    # [ln1w, ln1b, bqkv(3D), bo, ln2w, ln2b, b1(hidden), b2]
    sp = sp_ref[0, 0]                     # (1, 9D + hidden) f32
    ln1w = sp[:, 0:D]
    ln1b = sp[:, D:2 * D]
    bqkv = sp[:, 2 * D:5 * D]
    bo = sp[:, 5 * D:6 * D]
    ln2w = sp[:, 6 * D:7 * D]
    ln2b = sp[:, 7 * D:8 * D]
    b1 = sp[:, 8 * D:8 * D + hidden]
    b2 = sp[:, 8 * D + hidden:9 * D + hidden]

    # ---- attention (flash-style over KV chunks) --------------------------
    h = _layer_norm(x, ln1w, ln1b)
    qkv = jnp.dot(h.astype(bf16), wqkv_ref[0, 0],
                  preferred_element_type=jnp.float32) + bqkv    # (N, 3D)

    def heads(mat):                       # (N, D) -> (H, N, hd), one reshape
        return mat.reshape(N, H, hd).swapaxes(0, 1).astype(bf16)

    q = heads(qkv[:, 0 * D:1 * D])
    k = heads(qkv[:, 1 * D:2 * D])
    v = heads(qkv[:, 2 * D:3 * D])

    m_i = jnp.full((H, N, 1), -jnp.inf, jnp.float32)
    l_i = jnp.zeros((H, N, 1), jnp.float32)
    acc = jnp.zeros((H, N, hd), jnp.float32)
    for c in range(N // kv_chunk):        # static trip count
        kc = k[:, c * kv_chunk:(c + 1) * kv_chunk, :]
        vc = v[:, c * kv_chunk:(c + 1) * kv_chunk, :]
        s = jnp.einsum('hqd,hkd->hqk', q, kc,
                       preferred_element_type=jnp.float32) * scale
        m_new = jnp.maximum(m_i, jnp.max(s, axis=-1, keepdims=True))
        a = jnp.exp(m_i - m_new)
        p = jnp.exp(s - m_new)
        l_i = a * l_i + jnp.sum(p, axis=-1, keepdims=True)
        acc = a * acc + jnp.einsum('hqk,hkd->hqd', p.astype(bf16), vc,
                                   preferred_element_type=jnp.float32)
        m_i = m_new
    ctx = acc * pl.reciprocal(l_i, approx=True)                 # (H, N, hd)
    attn = ctx.swapaxes(0, 1).reshape(N, D)                     # merge heads
    attn = jnp.dot(attn.astype(bf16), wo_ref[0, 0],
                   preferred_element_type=jnp.float32) + bo
    x = x + attn

    # ---- MLP (hidden dim chunked, (N,4D) never materialized) -------------
    h2 = _layer_norm(x, ln2w, ln2b).astype(bf16)
    mlp = jnp.zeros((N, D), jnp.float32)
    for c in range(hidden // mlp_chunk):  # static trip count
        lo = c * mlp_chunk
        mc = jnp.dot(h2, w1_ref[0, 0, :, lo:lo + mlp_chunk],
                     preferred_element_type=jnp.float32) + b1[:, lo:lo + mlp_chunk]
        mc = jax.nn.gelu(mc, approximate=False)   # exact GELU == nn.GELU()
        mlp = mlp + jnp.dot(mc.astype(bf16), w2_ref[0, 0, lo:lo + mlp_chunk, :],
                            preferred_element_type=jnp.float32)
    x = x + mlp + b2

    o_ref[0, 0] = x                       # residual stays resident in VMEM
    if apply_final_norm:                  # static flag: fold encoder_norm
        @pl.when(layer == last)
        def _():
            o_ref[0, 0] = _layer_norm(x, fnw_ref[0], fnb_ref[0])


def _dual_head_kernel(x_ref, lnw_ref, lnb_ref, w_ref, b_ref, o_ref):
    """Fused (decoder LayerNorm + reconstruction head) per branch/row-tile.

    Output last dim is padded to a multiple of 128 lanes (lane-dense stores).
    """
    x = x_ref[0]
    h = _layer_norm(x, lnw_ref[0], lnb_ref[0])
    o_ref[0] = jnp.dot(h.astype(jnp.bfloat16), w_ref[0],
                       preferred_element_type=jnp.float32) + b_ref[0]


# ----------------------------------------------------------------------------
# Pallas wrappers
# ----------------------------------------------------------------------------

def pallas_embed_fuse(rgb_pat, dep_pat, mask_f, params):
    B, N, Kr = rgb_pat.shape
    Kd = dep_pat.shape[-1]
    E = params["rgb_proj_w"].shape[-1]
    tm = _row_tile(N)
    return pl.pallas_call(
        _embed_fuse_kernel,
        out_shape=jax.ShapeDtypeStruct((B, N, E), jnp.bfloat16),
        grid=(B, N // tm),
        in_specs=[
            pl.BlockSpec((1, tm, Kr), lambda b, i: (b, i, 0)),
            pl.BlockSpec((1, tm, Kd), lambda b, i: (b, i, 0)),
            pl.BlockSpec((Kr, E), lambda b, i: (0, 0)),
            pl.BlockSpec((1, E), lambda b, i: (0, 0)),
            pl.BlockSpec((Kd, E), lambda b, i: (0, 0)),
            pl.BlockSpec((1, E), lambda b, i: (0, 0)),
            pl.BlockSpec((1, tm, 1), lambda b, i: (b, i, 0)),
            pl.BlockSpec((1, E), lambda b, i: (0, 0)),
            pl.BlockSpec((tm, E), lambda b, i: (i, 0)),
        ],
        out_specs=pl.BlockSpec((1, tm, E), lambda b, i: (b, i, 0)),
        compiler_params=pltpu.CompilerParams(
            dimension_semantics=("parallel", "parallel"),
            vmem_limit_bytes=_vmem_limit_bytes()),
    )(rgb_pat, dep_pat,
      params["rgb_proj_w"], params["rgb_proj_b"].reshape(1, E),
      params["depth_proj_w"], params["depth_proj_b"].reshape(1, E),
      mask_f, params["mask_token"].reshape(1, E),
      params["pos_embed"].reshape(N, E))


def pallas_blocks(x, stack, num_heads, *, final_norm=None):
    """Run a stack of transformer blocks.

    stack arrays have leading dims (G, L, ...): G branches sharing the same
    input x, L layers each.  Returns (G, B, N, D) f32.
    """
    G, L, D, _ = stack["wqkv"].shape
    hidden = stack["w1"].shape[-1]
    B, N, _ = x.shape
    if final_norm is None:
        apply_final_norm = False
        fnw = jnp.ones((G, 1, D), jnp.float32)
        fnb = jnp.zeros((G, 1, D), jnp.float32)
    else:
        apply_final_norm = True
        fnw, fnb = final_norm

    kv_chunk = _chunk(N, 512)        # flash-style KV tile
    mlp_chunk = _chunk(hidden, 1024)  # MLP hidden tile

    def lspec(shape):
        blk = (1, 1) + tuple(shape[2:])
        zeros = (0,) * (len(shape) - 2)
        return pl.BlockSpec(blk, lambda g, b, l, _z=zeros: (g, l) + _z)

    kernel = functools.partial(
        _blocks_kernel, num_heads=num_heads, hidden=hidden,
        apply_final_norm=apply_final_norm, kv_chunk=kv_chunk,
        mlp_chunk=mlp_chunk)

    return pl.pallas_call(
        kernel,
        out_shape=jax.ShapeDtypeStruct((G, B, N, D), jnp.float32),
        grid=(G, B, L),
        in_specs=[
            # TODO(synk): pipeline_mode=pl.Buffered(1) (or pl.ANY + one-shot
            # DMA at layer==0) for x to reclaim its second VMEM buffer on v7x.
            pl.BlockSpec((1, N, D), lambda g, b, l: (b, 0, 0)),     # x (bf16/f32)
            lspec(stack["wqkv"].shape),
            lspec(stack["wo"].shape),
            lspec(stack["w1"].shape),
            lspec(stack["w2"].shape),
            lspec(stack["small"].shape),                            # packed params
            pl.BlockSpec((1, 1, D), lambda g, b, l: (g, 0, 0)),     # final-norm w
            pl.BlockSpec((1, 1, D), lambda g, b, l: (g, 0, 0)),     # final-norm b
        ],
        out_specs=pl.BlockSpec((1, 1, N, D), lambda g, b, l: (g, b, 0, 0)),
        compiler_params=pltpu.CompilerParams(
            dimension_semantics=("parallel", "parallel", "arbitrary"),
            vmem_limit_bytes=_vmem_limit_bytes()),
    )(x, stack["wqkv"], stack["wo"], stack["w1"], stack["w2"], stack["small"],
      fnw, fnb)


def pallas_dual_head(x2, lnw2, lnb2, w2, b2):
    """Fused (decoder_norm + head) for both branches.  x2: (2, M, E) f32."""
    G, M, E = x2.shape
    Opad = w2.shape[-1]
    tm = _row_tile(M)
    return pl.pallas_call(
        _dual_head_kernel,
        out_shape=jax.ShapeDtypeStruct((G, M, Opad), jnp.float32),
        grid=(G, M // tm),
        in_specs=[
            pl.BlockSpec((1, tm, E), lambda g, i: (g, i, 0)),
            pl.BlockSpec((1, 1, E), lambda g, i: (g, 0, 0)),
            pl.BlockSpec((1, 1, E), lambda g, i: (g, 0, 0)),
            pl.BlockSpec((1, E, Opad), lambda g, i: (g, 0, 0)),
            pl.BlockSpec((1, 1, Opad), lambda g, i: (g, 0, 0)),
        ],
        out_specs=pl.BlockSpec((1, tm, Opad), lambda g, i: (g, i, 0)),
        compiler_params=pltpu.CompilerParams(
            dimension_semantics=("parallel", "parallel"),
            vmem_limit_bytes=_vmem_limit_bytes()),
    )(x2, lnw2, lnb2, w2, b2)


# ----------------------------------------------------------------------------
# Model (parameter init + forward)
# ----------------------------------------------------------------------------

def init_block_stack(key, num_branches, num_layers, dim, mlp_ratio):
    hidden = dim * mlp_ratio
    f32, bf16 = jnp.float32, jnp.bfloat16
    G, L = num_branches, num_layers
    k = jax.random.split(key, 4)
    ones = lambda w: jnp.ones((G, L, 1, w), f32)
    zeros = lambda w: jnp.zeros((G, L, 1, w), f32)
    # Packed layer-local small params; order matches _blocks_kernel slicing:
    # [ln1w, ln1b, bqkv(3D), bo, ln2w, ln2b, b1(hidden), b2]
    small = jnp.concatenate(
        [ones(dim), zeros(dim), zeros(3 * dim), zeros(dim),
         ones(dim), zeros(dim), zeros(hidden), zeros(dim)], axis=-1)
    return dict(
        wqkv=(0.02 * jax.random.normal(k[0], (G, L, dim, 3 * dim), f32)).astype(bf16),
        wo=(0.02 * jax.random.normal(k[1], (G, L, dim, dim), f32)).astype(bf16),
        w1=(0.02 * jax.random.normal(k[2], (G, L, dim, hidden), f32)).astype(bf16),
        w2=(0.02 * jax.random.normal(k[3], (G, L, hidden, dim), f32)).astype(bf16),
        small=small,
    )


def init_params(key, cfg):
    p = cfg["patch_size"]
    ts = cfg["tubelet_size"]
    E = cfg["embed_dim"]
    Ed = cfg["decoder_embed_dim"]
    num_tubelets = (cfg["num_frames"] // ts) * (cfg["img_size"] // p) ** 2
    f32, bf16 = jnp.float32, jnp.bfloat16
    k = jax.random.split(key, 8)

    o_rgb, o_dep = p * p * 3, p * p * 1
    o_pad = ((max(o_rgb, o_dep) + 127) // 128) * 128      # lane-dense head out
    head_w = jnp.zeros((2, Ed, o_pad), f32)
    head_w = head_w.at[0, :, :o_rgb].set(
        0.02 * jax.random.normal(k[5], (Ed, o_rgb), f32))
    head_w = head_w.at[1, :, :o_dep].set(
        0.02 * jax.random.normal(k[6], (Ed, o_dep), f32))

    params = dict(
        rgb_proj_w=(0.02 * jax.random.normal(k[0], (3 * ts * p * p, E), f32)).astype(bf16),
        rgb_proj_b=jnp.zeros((E,), f32),
        depth_proj_w=(0.02 * jax.random.normal(k[1], (1 * ts * p * p, E), f32)).astype(bf16),
        depth_proj_b=jnp.zeros((E,), f32),
        pos_embed=0.02 * jax.random.normal(k[2], (1, num_tubelets, E), f32),
        mask_token=0.02 * jax.random.normal(k[3], (1, 1, E), f32),
        encoder=init_block_stack(k[4], 1, cfg["num_layers_encoder"], E,
                                 cfg["encoder_mlp_ratio"]),
        encoder_norm_w=jnp.ones((1, 1, E), f32),
        encoder_norm_b=jnp.zeros((1, 1, E), f32),
        # branch 0 = rgb decoder, branch 1 = depth decoder
        decoders=init_block_stack(k[7], 2, cfg["num_layers_decoder"], Ed,
                                  cfg["decoder_mlp_ratio"]),
        dec_norm_w=jnp.ones((2, 1, Ed), f32),
        dec_norm_b=jnp.zeros((2, 1, Ed), f32),
        head_w=head_w.astype(bf16),
        head_b=jnp.zeros((2, 1, o_pad), f32),
    )
    return params, num_tubelets


def cross_modal_videomae_forward(params, cfg, rgb_frames, depth_maps, masks):
    """Returns (rgb_reconstruction [B,N,p^2*3], depth_reconstruction [B,N,p^2*1])."""
    B, C, T, H, W = rgb_frames.shape
    assert C == 3 and depth_maps.shape[1] == 1
    p = cfg["patch_size"]
    ts = cfg["tubelet_size"]
    E = cfg["embed_dim"]
    # NOTE: embed_dim == decoder_embed_dim path only (the reference module's
    # "!=" branch constructs an unused nn.Linear and is effectively broken).
    assert cfg["embed_dim"] == cfg["decoder_embed_dim"]

    # Tubelet patches (Conv3d with kernel == stride as matmul rows), bf16 I/O.
    rgb_pat = tubelet_patches(rgb_frames, ts, p).astype(jnp.bfloat16)
    dep_pat = tubelet_patches(depth_maps, ts, p).astype(jnp.bfloat16)
    N = rgb_pat.shape[1]

    # Fused: both projections + modality fuse + mask token + pos embed (bf16 out).
    mask_f = masks.astype(jnp.float32)[:, :, None]    # (B, N, 1)
    x = pallas_embed_fuse(rgb_pat, dep_pat, mask_f, params)   # (B, N, E) bf16

    # Encoder: all layers in one pallas_call, encoder_norm folded into the last.
    enc = pallas_blocks(
        x, params["encoder"], cfg["encoder_num_heads"],
        final_norm=(params["encoder_norm_w"], params["encoder_norm_b"]))
    dec_in = enc[0]                                   # (B, N, E) f32

    # Both decoder branches in one pallas_call (branch axis: 0=rgb, 1=depth).
    dec = pallas_blocks(dec_in, params["decoders"], cfg["decoder_num_heads"])

    # Fused (decoder_norm + reconstruction head), lane-padded outputs.
    M = B * N
    heads_in = dec.reshape(2, M, E)
    out = pallas_dual_head(heads_in, params["dec_norm_w"], params["dec_norm_b"],
                           params["head_w"], params["head_b"])   # (2, M, Opad)
    o_rgb, o_dep = p * p * 3, p * p * 1
    rgb_recon = out[0, :, :o_rgb].reshape(B, N, o_rgb)
    depth_recon = out[1, :, :o_dep].reshape(B, N, o_dep)
    return rgb_recon, depth_recon


# ----------------------------------------------------------------------------
# Main
# ----------------------------------------------------------------------------

if __name__ == "__main__":
    cfg = dict(
        img_size=16, patch_size=8, num_frames=4, tubelet_size=2,
        embed_dim=32, decoder_embed_dim=32,
        encoder_num_heads=4, encoder_mlp_ratio=4, num_layers_encoder=2,
        decoder_num_heads=4, decoder_mlp_ratio=4, num_layers_decoder=1,
        alpha=1.0, beta=1.0,
    )

    key = jax.random.PRNGKey(0)
    k_param, k_rgb, k_dep, k_mask = jax.random.split(key, 4)
    params, num_tubelets = init_params(k_param, cfg)

    B = 2
    rgb_frames = jax.random.normal(
        k_rgb, (B, 3, cfg["num_frames"], cfg["img_size"], cfg["img_size"]),
        jnp.float32)
    depth_maps = jax.random.normal(
        k_dep, (B, 1, cfg["num_frames"], cfg["img_size"], cfg["img_size"]),
        jnp.float32)
    masks = jax.random.bernoulli(k_mask, 0.75, (B, num_tubelets))

    rgb_recon, depth_recon = cross_modal_videomae_forward(
        params, cfg, rgb_frames, depth_maps, masks)
    jax.block_until_ready((rgb_recon, depth_recon))

    assert rgb_recon.shape == (B, num_tubelets, cfg["patch_size"] ** 2 * 3)
    assert depth_recon.shape == (B, num_tubelets, cfg["patch_size"] ** 2 * 1)
    assert jnp.all(jnp.isfinite(rgb_recon)) and jnp.all(jnp.isfinite(depth_recon))
    print("KERNEL_OK")
</pallas_src>

<mosaic_0001>
module attributes {stable_mosaic.version = 11 : i64} {
  func.func @_embed_fuse_kernel(%arg0: i32, %arg1: i32, %arg2: memref<1x8x384xbf16, #tpu.memory_space<vmem>>, %arg3: memref<1x8x128xbf16, #tpu.memory_space<vmem>>, %arg4: memref<384x32xbf16, #tpu.memory_space<vmem>>, %arg5: memref<1x32xf32, #tpu.memory_space<vmem>>, %arg6: memref<128x32xbf16, #tpu.memory_space<vmem>>, %arg7: memref<1x32xf32, #tpu.memory_space<vmem>>, %arg8: memref<1x8x1xf32, #tpu.memory_space<vmem>>, %arg9: memref<1x32xf32, #tpu.memory_space<vmem>>, %arg10: memref<8x32xf32, #tpu.memory_space<vmem>>, %arg11: memref<1x8x32xbf16, #tpu.memory_space<vmem>>) attributes {dimension_semantics = [#tpu.dimension_semantics<parallel>, #tpu.dimension_semantics<parallel>], iteration_bounds = array<i64: 2, 1>, scalar_prefetch = 0 : i64, scratch_operands = 0 : i64, tpu.core_type = #tpu.core_type<tc>, window_params = [{transform_indices = @transform_0, window_bounds = array<i64: 1, 8, 384>}, {transform_indices = @transform_1, window_bounds = array<i64: 1, 8, 128>}, {pipeline_mode = #tpu.pipeline_mode<synchronous>, transform_indices = @transform_2, window_bounds = array<i64: 384, 32>}, {pipeline_mode = #tpu.pipeline_mode<synchronous>, transform_indices = @transform_3, window_bounds = array<i64: 1, 32>}, {pipeline_mode = #tpu.pipeline_mode<synchronous>, transform_indices = @transform_4, window_bounds = array<i64: 128, 32>}, {pipeline_mode = #tpu.pipeline_mode<synchronous>, transform_indices = @transform_5, window_bounds = array<i64: 1, 32>}, {transform_indices = @transform_6, window_bounds = array<i64: 1, 8, 1>}, {pipeline_mode = #tpu.pipeline_mode<synchronous>, transform_indices = @transform_7, window_bounds = array<i64: 1, 32>}, {transform_indices = @transform_8, window_bounds = array<i64: 8, 32>}, {transform_indices = @transform_9, window_bounds = array<i64: 1, 8, 32>}]} {
    %c0 = arith.constant 0 : index
    %c0_0 = arith.constant 0 : index
    %c0_1 = arith.constant 0 : index
    %0 = vector.load %arg2[%c0, %c0_0, %c0_1] : memref<1x8x384xbf16, #tpu.memory_space<vmem>>, vector<1x8x384xbf16>
    %1 = vector.shape_cast %0 : vector<1x8x384xbf16> to vector<8x384xbf16>
    %c0_2 = arith.constant 0 : index
    %c0_3 = arith.constant 0 : index
    %2 = vector.load %arg4[%c0_2, %c0_3] : memref<384x32xbf16, #tpu.memory_space<vmem>>, vector<384x32xbf16>
    %cst = arith.constant dense<0.000000e+00> : vector<8x32xf32>
    %3 = tpu.matmul %1, %2, %cst {dimension_numbers = #tpu.dot_dimension_numbers<[1], [0], [0], [1], [0, 0, 1, 1], [], []>} : vector<8x384xbf16>, vector<384x32xbf16>, vector<8x32xf32> -> vector<8x32xf32>
    %c0_4 = arith.constant 0 : index
    %c0_5 = arith.constant 0 : index
    %4 = vector.load %arg5[%c0_4, %c0_5] : memref<1x32xf32, #tpu.memory_space<vmem>>, vector<1x32xf32>
    %5 = vector.broadcast %4 : vector<1x32xf32> to vector<8x32xf32>
    %6 = arith.addf %3, %5 : vector<8x32xf32>
    %c0_6 = arith.constant 0 : index
    %c0_7 = arith.constant 0 : index
    %c0_8 = arith.constant 0 : index
    %7 = vector.load %arg3[%c0_6, %c0_7, %c0_8] : memref<1x8x128xbf16, #tpu.memory_space<vmem>>, vector<1x8x128xbf16>
    %8 = vector.shape_cast %7 : vector<1x8x128xbf16> to vector<8x128xbf16>
    %c0_9 = arith.constant 0 : index
    %c0_10 = arith.constant 0 : index
    %9 = vector.load %arg6[%c0_9, %c0_10] : memref<128x32xbf16, #tpu.memory_space<vmem>>, vector<128x32xbf16>
    %cst_11 = arith.constant dense<0.000000e+00> : vector<8x32xf32>
    %10 = tpu.matmul %8, %9, %cst_11 {dimension_numbers = #tpu.dot_dimension_numbers<[1], [0], [0], [1], [0, 0, 1, 1], [], []>} : vector<8x128xbf16>, vector<128x32xbf16>, vector<8x32xf32> -> vector<8x32xf32>
    %c0_12 = arith.constant 0 : index
    %c0_13 = arith.constant 0 : index
    %11 = vector.load %arg7[%c0_12, %c0_13] : memref<1x32xf32, #tpu.memory_space<vmem>>, vector<1x32xf32>
    %12 = vector.broadcast %11 : vector<1x32xf32> to vector<8x32xf32>
    %13 = arith.addf %10, %12 : vector<8x32xf32>
    %14 = arith.addf %6, %13 : vector<8x32xf32>
    %c0_14 = arith.constant 0 : index
    %c0_15 = arith.constant 0 : index
    %c0_16 = arith.constant 0 : index
    %15 = vector.load %arg8[%c0_14, %c0_15, %c0_16] : memref<1x8x1xf32, #tpu.memory_space<vmem>>, vector<1x8x1xf32>
    %16 = vector.shape_cast %15 : vector<1x8x1xf32> to vector<8x1xf32>
    %cst_17 = arith.constant 5.000000e-01 : f32
    %17 = vector.broadcast %cst_17 : f32 to vector<8x1xf32>
    %18 = arith.cmpf ogt, %16, %17 : vector<8x1xf32>
    %c0_18 = arith.constant 0 : index
    %c0_19 = arith.constant 0 : index
    %19 = vector.load %arg9[%c0_18, %c0_19] : memref<1x32xf32, #tpu.memory_space<vmem>>, vector<1x32xf32>
    %20 = vector.shape_cast %18 : vector<8x1xi1> to vector<8x1xi1>
    %21 = vector.broadcast %20 : vector<8x1xi1> to vector<8x32xi1>
    %22 = vector.shape_cast %19 : vector<1x32xf32> to vector<1x32xf32>
    %23 = vector.broadcast %22 : vector<1x32xf32> to vector<8x32xf32>
    %24 = arith.select %21, %23, %14 : vector<8x32xi1>, vector<8x32xf32>
    %c0_20 = arith.constant 0 : index
    %c0_21 = arith.constant 0 : index
    %25 = vector.load %arg10[%c0_20, %c0_21] : memref<8x32xf32, #tpu.memory_space<vmem>>, vector<8x32xf32>
    %26 = arith.addf %24, %25 : vector<8x32xf32>
    %27 = arith.truncf %26 : vector<8x32xf32> to vector<8x32xbf16>
    %c0_22 = arith.constant 0 : index
    %c0_23 = arith.constant 0 : index
    %c0_24 = arith.constant 0 : index
    %28 = vector.load %arg11[%c0_22, %c0_23, %c0_24] : memref<1x8x32xbf16, #tpu.memory_space<vmem>>, vector<1x8x32xbf16>
    %29 = vector.shape_cast %28 : vector<1x8x32xbf16> to vector<8x32xbf16>
    %30 = vector.shape_cast %27 : vector<8x32xbf16> to vector<1x8x32xbf16>
    tpu.vector_store %arg11[%c0_22, %c0_23, %c0_24], %30 {strides = array<i32>} : memref<1x8x32xbf16, #tpu.memory_space<vmem>>, vector<1x8x32xbf16>,
    return
  }
  func.func @transform_0(%arg0: i32, %arg1: i32) -> (i32, i32, i32) {
    %c0_i32 = arith.constant 0 : i32
    %c0_i32_0 = arith.constant 0 : i32
    return %arg0, %arg1, %c0_i32 : i32, i32, i32
  }
  func.func @transform_1(%arg0: i32, %arg1: i32) -> (i32, i32, i32) {
    %c0_i32 = arith.constant 0 : i32
    %c0_i32_0 = arith.constant 0 : i32
    return %arg0, %arg1, %c0_i32 : i32, i32, i32
  }
  func.func @transform_2(%arg0: i32, %arg1: i32) -> (i32, i32) {
    %c0_i32 = arith.constant 0 : i32
    %c0_i32_0 = arith.constant 0 : i32
    %c0_i32_1 = arith.constant 0 : i32
    return %c0_i32, %c0_i32_0 : i32, i32
  }
  func.func @transform_3(%arg0: i32, %arg1: i32) -> (i32, i32) {
    %c0_i32 = arith.constant 0 : i32
    %c0_i32_0 = arith.constant 0 : i32
    %c0_i32_1 = arith.constant 0 : i32
    return %c0_i32, %c0_i32_0 : i32, i32
  }
  func.func @transform_4(%arg0: i32, %arg1: i32) -> (i32, i32) {
    %c0_i32 = arith.constant 0 : i32
    %c0_i32_0 = arith.constant 0 : i32
    %c0_i32_1 = arith.constant 0 : i32
    return %c0_i32, %c0_i32_0 : i32, i32
  }
  func.func @transform_5(%arg0: i32, %arg1: i32) -> (i32, i32) {
    %c0_i32 = arith.constant 0 : i32
    %c0_i32_0 = arith.constant 0 : i32
    %c0_i32_1 = arith.constant 0 : i32
    return %c0_i32, %c0_i32_0 : i32, i32
  }
  func.func @transform_6(%arg0: i32, %arg1: i32) -> (i32, i32, i32) {
    %c0_i32 = arith.constant 0 : i32
    %c0_i32_0 = arith.constant 0 : i32
    return %arg0, %arg1, %c0_i32 : i32, i32, i32
  }
  func.func @transform_7(%arg0: i32, %arg1: i32) -> (i32, i32) {
    %c0_i32 = arith.constant 0 : i32
    %c0_i32_0 = arith.constant 0 : i32
    %c0_i32_1 = arith.constant 0 : i32
    return %c0_i32, %c0_i32_0 : i32, i32
  }
  func.func @transform_8(%arg0: i32, %arg1: i32) -> (i32, i32) {
    %c0_i32 = arith.constant 0 : i32
    %c0_i32_0 = arith.constant 0 : i32
    return %arg1, %c0_i32 : i32, i32
  }
  func.func @transform_9(%arg0: i32, %arg1: i32) -> (i32, i32, i32) {
    %c0_i32 = arith.constant 0 : i32
    %c0_i32_0 = arith.constant 0 : i32
    return %arg0, %arg1, %c0_i32 : i32, i32, i32
  }
}

</mosaic_0001>

<llo_original>
// kernel: tpu_custom_call.1
$region0: #{tpu_custom_call.1}
  #allocation0 [shape = 'u32[]', space=smem, size = 0x4, offset = 0x4, fixed_abs, tag = 'smem constant byte address 0x4 - core index']
  #allocation1 [shape = 'u32[72,128]{1,0:T(1,128)}', space=vmem, size = 0x9000, scoped, tag = 'internal scratch']
  %s0 = inlined_call_operand.vmem [shape: bf16[2,8,384], index: 0, kind: input, shape index: {}]
  %s1 = inlined_call_operand.vmem [shape: bf16[2,8,128], index: 1, kind: input, shape index: {}]
  %s2 = inlined_call_operand.vmem [shape: bf16[384,32], index: 2, kind: input, shape index: {}]
  %s3 = inlined_call_operand.vmem [shape: f32[1,32], index: 3, kind: input, shape index: {}]
  %s4 = inlined_call_operand.vmem [shape: bf16[128,32], index: 4, kind: input, shape index: {}]
  %s5 = inlined_call_operand.vmem [shape: f32[1,32], index: 5, kind: input, shape index: {}]
  %s6 = inlined_call_operand.vmem [shape: f32[2,8,1], index: 6, kind: input, shape index: {}]
  %s7 = inlined_call_operand.vmem [shape: f32[1,32], index: 7, kind: input, shape index: {}]
  %s8 = inlined_call_operand.vmem [shape: f32[8,32], index: 8, kind: input, shape index: {}]
  %s9 = inlined_call_operand.hbm [shape: bf16[2,8,32], index: 9, kind: output, shape index: {}]
  %s10 = sld [smem:[#allocation0]]
  $region69: #{tpu_custom_call.1} parent=0
    _
  %s12 = ssub.s32 1, %s10
  %s13 = scalar_select 0, %s12, %s10
  $region1: #{tpu_custom_call.1} parent=0
    #allocation2 [shape = 'u8[4096]{0}', space=vmem, size = 0x1000, scoped, tag = 'output window, operand 0']
    #allocation3 [shape = 's32[2]{0}', space=sflag, size = 0x8, scoped, tag = 'scoped memory for tpu_custom_call.1']
    %14 = vsyncpa [#allocation3], 0
    %s15 = scalar_lea.sflag [#allocation3], 1
    %16 = vsyncpa %s15, 0
    loop: start=0, step=1, limit=4
    $region2: #{tpu_custom_call.1} parent=1 // loop_pre_header
      _
    $region3: #{tpu_custom_call.1} parent=1 // loop_header
      %s18 = sphi 0, %s22
      %p19 = scmp.ge.s32.totalorder %s18, 4
      %s25 = sphi 0, %s37
      %s26 = sphi 0, %s33
      %s27 = sphi 0, %s25
      %s28 = sphi 0, %s26
      %s29 = sphi 0, %s27
      %s30 = sphi 0, %s28
      %s42 = sphi 0, %s44
      %s45 = sphi 0, %s42
      %s46 = sphi 0, %s45
      %s62 = sphi 0, %s46
      %s70 = sphi 0, %s72
      %s73 = sphi 0, %s70
      %s74 = sphi 0, %s73
      %s90 = sphi 0, %s74
      %s94 = sphi 0, %s94
      %s96 = sphi 0, %s94
      %s97 = sphi 0, %s96
      %s111 = sphi 0, %s97
      %s115 = sphi 0, %s115
      %s117 = sphi 0, %s115
      %s118 = sphi 0, %s117
      %s132 = sphi 0, %s118
      %s136 = sphi 0, %s136
      %s138 = sphi 0, %s136
      %s139 = sphi 0, %s138
      %s153 = sphi 0, %s139
      %s157 = sphi 0, %s157
      %s159 = sphi 0, %s157
      %s160 = sphi 0, %s159
      %s174 = sphi 0, %s160
      %s182 = sphi 0, %s184
      %s185 = sphi 0, %s182
      %s186 = sphi 0, %s185
      %s202 = sphi 0, %s186
      %s206 = sphi 0, %s206
      %s208 = sphi 0, %s206
      %s209 = sphi 0, %s208
      %s223 = sphi 0, %s209
      %s229 = sphi 0, %s231
      %s232 = sphi 0, %s229
      %s233 = sphi 0, %s232
      %s249 = sphi 0, %s233
      %s257 = sphi 0, %s259
      %s260 = sphi 0, %s257
      %s261 = sphi 0, %s260
      %s277 = sphi 0, %s261
    $region4: #{tpu_custom_call.1} parent=1 // loop_header_branch
      %21 = sbr.rel (%p19) target = $region8
    $region5: #{tpu_custom_call.1} parent=1 // loop_body
      %s23 = ssub.s32 %s18, 1
      %s24 = ssub.s32 %s18, 2
      %s31 = sadd.s32 1, %s26
      %p32 = scmp.ge.s32.totalorder %s31, 1
      %s33 = scalar_select %p32, 0, %s31
      %s34 = sadd.s32 1, %s25
      %s35 = scalar_select %p32, %s34, %s25
      %p36 = scmp.ge.s32.totalorder %s35, 2
      %s37 = scalar_select %p36, 0, %s35
      %s38 = ssub.s32 %s25, %s37
      %s39 = ssub.s32 %s26, %s33
      %s40 = sor.u32 %s38, %s39
      %p41 = scmp.eq.s32.totalorder %s40, 0
      %s43 = sadd.s32 %s42, 1
      %s44 = scalar_select %p41, %s42, %s43
      %p47 = pneg %p41
      %p48 = scmp.eq.s32.totalorder %s18, 1
      %p49 = por %p47, %p48
      %p50 = scmp.ne.s32.totalorder %s42, %s45
      %p51 = scmp.eq.s32.totalorder %s18, 0
      %p52 = por %p50, %p51
      %p53 = scmp.ne.s32.totalorder %s42, %s45
      %p54 = scmp.eq.s32.totalorder %s23, 1
      %p55 = por %p53, %p54
      %p56 = scmp.ne.s32.totalorder %s45, %s46
      %p57 = scmp.eq.s32.totalorder %s23, 0
      %p58 = por %p56, %p57
      %p59 = scmp.ne.s32.totalorder %s45, %s46
      %p60 = scmp.eq.s32.totalorder %s24, 1
      %p61 = por %p59, %p60
      %p63 = scmp.ne.s32.totalorder %s46, %s62
      %p64 = scmp.eq.s32.totalorder %s24, 0
      %p65 = por %p63, %p64
      %s66 = ssub.s32 %s25, %s37
      %s67 = ssub.s32 %s26, %s33
      %s68 = sor.u32 %s66, %s67
      %p69 = scmp.eq.s32.totalorder %s68, 0
      %s71 = sadd.s32 %s70, 1
      %s72 = scalar_select %p69, %s70, %s71
      %p75 = pneg %p69
      %p76 = scmp.eq.s32.totalorder %s18, 1
      %p77 = por %p75, %p76
      %p78 = scmp.ne.s32.totalorder %s70, %s73
      %p79 = scmp.eq.s32.totalorder %s18, 0
      %p80 = por %p78, %p79
      %p81 = scmp.ne.s32.totalorder %s70, %s73
      %p82 = scmp.eq.s32.totalorder %s23, 1
      %p83 = por %p81, %p82
      %p84 = scmp.ne.s32.totalorder %s73, %s74
      %p85 = scmp.eq.s32.totalorder %s23, 0
      %p86 = por %p84, %p85
      %p87 = scmp.ne.s32.totalorder %s73, %s74
      %p88 = scmp.eq.s32.totalorder %s24, 1
      %p89 = por %p87, %p88
      %p91 = scmp.ne.s32.totalorder %s74, %s90
      %p92 = scmp.eq.s32.totalorder %s24, 0
      %p93 = por %p91, %p92
      %s95 = sadd.s32 %s94, 1
      %p98 = scmp.eq.s32.totalorder %s18, 1
      %p99 = scmp.ne.s32.totalorder %s94, %s96
      %p100 = scmp.eq.s32.totalorder %s18, 0
      %p101 = por %p99, %p100
      %p102 = scmp.ne.s32.totalorder %s94, %s96
      %p103 = scmp.eq.s32.totalorder %s23, 1
      %p104 = por %p102, %p103
      %p105 = scmp.ne.s32.totalorder %s96, %s97
      %p106 = scmp.eq.s32.totalorder %s23, 0
      %p107 = por %p105, %p106
      %p108 = scmp.ne.s32.totalorder %s96, %s97
      %p109 = scmp.eq.s32.totalorder %s24, 1
      %p110 = por %p108, %p109
      %p112 = scmp.ne.s32.totalorder %s97, %s111
      %p113 = scmp.eq.s32.totalorder %s24, 0
      %p114 = por %p112, %p113
      %s116 = sadd.s32 %s115, 1
      %p119 = scmp.eq.s32.totalorder %s18, 1
      %p120 = scmp.ne.s32.totalorder %s115, %s117
      %p121 = scmp.eq.s32.totalorder %s18, 0
      %p122 = por %p120, %p121
      %p123 = scmp.ne.s32.totalorder %s115, %s117
      %p124 = scmp.eq.s32.totalorder %s23, 1
      %p125 = por %p123, %p124
      %p126 = scmp.ne.s32.totalorder %s117, %s118
      %p127 = scmp.eq.s32.totalorder %s23, 0
      %p128 = por %p126, %p127
      %p129 = scmp.ne.s32.totalorder %s117, %s118
      %p130 = scmp.eq.s32.totalorder %s24, 1
      %p131 = por %p129, %p130
      %p133 = scmp.ne.s32.totalorder %s118, %s132
      %p134 = scmp.eq.s32.totalorder %s24, 0
      %p135 = por %p133, %p134
      %s137 = sadd.s32 %s136, 1
      %p140 = scmp.eq.s32.totalorder %s18, 1
      %p141 = scmp.ne.s32.totalorder %s136, %s138
      %p142 = scmp.eq.s32.totalorder %s18, 0
      %p143 = por %p141, %p142
      %p144 = scmp.ne.s32.totalorder %s136, %s138
      %p145 = scmp.eq.s32.totalorder %s23, 1
      %p146 = por %p144, %p145
      %p147 = scmp.ne.s32.totalorder %s138, %s139
      %p148 = scmp.eq.s32.totalorder %s23, 0
      %p149 = por %p147, %p148
      %p150 = scmp.ne.s32.totalorder %s138, %s139
      %p151 = scmp.eq.s32.totalorder %s24, 1
      %p152 = por %p150, %p151
      %p154 = scmp.ne.s32.totalorder %s139, %s153
      %p155 = scmp.eq.s32.totalorder %s24, 0
      %p156 = por %p154, %p155
      %s158 = sadd.s32 %s157, 1
      %p161 = scmp.eq.s32.totalorder %s18, 1
      %p162 = scmp.ne.s32.totalorder %s157, %s159
      %p163 = scmp.eq.s32.totalorder %s18, 0
      %p164 = por %p162, %p163
      %p165 = scmp.ne.s32.totalorder %s157, %s159
      %p166 = scmp.eq.s32.totalorder %s23, 1
      %p167 = por %p165, %p166
      %p168 = scmp.ne.s32.totalorder %s159, %s160
      %p169 = scmp.eq.s32.totalorder %s23, 0
      %p170 = por %p168, %p169
      %p171 = scmp.ne.s32.totalorder %s159, %s160
      %p172 = scmp.eq.s32.totalorder %s24, 1
      %p173 = por %p171, %p172
      %p175 = scmp.ne.s32.totalorder %s160, %s174
      %p176 = scmp.eq.s32.totalorder %s24, 0
      %p177 = por %p175, %p176
      %s178 = ssub.s32 %s25, %s37
      %s179 = ssub.s32 %s26, %s33
      %s180 = sor.u32 %s178, %s179
      %p181 = scmp.eq.s32.totalorder %s180, 0
      %s183 = sadd.s32 %s182, 1
      %s184 = scalar_select %p181, %s182, %s183
      %p187 = pneg %p181
      %p188 = scmp.eq.s32.totalorder %s18, 1
      %p189 = por %p187, %p188
      %p190 = scmp.ne.s32.totalorder %s182, %s185
      %p191 = scmp.eq.s32.totalorder %s18, 0
      %p192 = por %p190, %p191
      %p193 = scmp.ne.s32.totalorder %s182, %s185
      %p194 = scmp.eq.s32.totalorder %s23, 1
      %p195 = por %p193, %p194
      %p196 = scmp.ne.s32.totalorder %s185, %s186
      %p197 = scmp.eq.s32.totalorder %s23, 0
      %p198 = por %p196, %p197
      %p199 = scmp.ne.s32.totalorder %s185, %s186
      %p200 = scmp.eq.s32.totalorder %s24, 1
      %p201 = por %p199, %p200
      %p203 = scmp.ne.s32.totalorder %s186, %s202
      %p204 = scmp.eq.s32.totalorder %s24, 0
      %p205 = por %p203, %p204
      %s207 = sadd.s32 %s206, 1
      %p210 = scmp.eq.s32.totalorder %s18, 1
      %p211 = scmp.ne.s32.totalorder %s206, %s208
      %p212 = scmp.eq.s32.totalorder %s18, 0
      %p213 = por %p211, %p212
      %p214 = scmp.ne.s32.totalorder %s206, %s208
      %p215 = scmp.eq.s32.totalorder %s23, 1
      %p216 = por %p214, %p215
      %p217 = scmp.ne.s32.totalorder %s208, %s209
      %p218 = scmp.eq.s32.totalorder %s23, 0
      %p219 = por %p217, %p218
      %p220 = scmp.ne.s32.totalorder %s208, %s209
      %p221 = scmp.eq.s32.totalorder %s24, 1
      %p222 = por %p220, %p221
      %p224 = scmp.ne.s32.totalorder %s209, %s223
      %p225 = scmp.eq.s32.totalorder %s24, 0
      %p226 = por %p224, %p225
      %s227 = ssub.s32 %s26, %s33
      %p228 = scmp.eq.s32.totalorder %s227, 0
      %s230 = sadd.s32 %s229, 1
      %s231 = scalar_select %p228, %s229, %s230
      %p234 = pneg %p228
      %p235 = scmp.eq.s32.totalorder %s18, 1
      %p236 = por %p234, %p235
      %p237 = scmp.ne.s32.totalorder %s229, %s232
      %p238 = scmp.eq.s32.totalorder %s18, 0
      %p239 = por %p237, %p238
      %p240 = scmp.ne.s32.totalorder %s229, %s232
      %p241 = scmp.eq.s32.totalorder %s23, 1
      %p242 = por %p240, %p241
      %p243 = scmp.ne.s32.totalorder %s232, %s233
      %p244 = scmp.eq.s32.totalorder %s23, 0
      %p245 = por %p243, %p244
      %p246 = scmp.ne.s32.totalorder %s232, %s233
      %p247 = scmp.eq.s32.totalorder %s24, 1
      %p248 = por %p246, %p247
      %p250 = scmp.ne.s32.totalorder %s233, %s249
      %p251 = scmp.eq.s32.totalorder %s24, 0
      %p252 = por %p250, %p251
      %s253 = ssub.s32 %s25, %s37
      %s254 = ssub.s32 %s26, %s33
      %s255 = sor.u32 %s253, %s254
      %p256 = scmp.eq.s32.totalorder %s255, 0
      %s258 = sadd.s32 %s257, 1
      %s259 = scalar_select %p256, %s257, %s258
      %p262 = pneg %p256
      %p263 = scmp.eq.s32.totalorder %s18, 1
      %p264 = por %p262, %p263
      %p265 = scmp.ne.s32.totalorder %s257, %s260
      %p266 = scmp.eq.s32.totalorder %s18, 0
      %p267 = por %p265, %p266
      %p268 = scmp.ne.s32.totalorder %s257, %s260
      %p269 = scmp.eq.s32.totalorder %s23, 1
      %p270 = por %p268, %p269
      %p271 = scmp.ne.s32.totalorder %s260, %s261
      %p272 = scmp.eq.s32.totalorder %s23, 0
      %p273 = por %p271, %p272
      %p274 = scmp.ne.s32.totalorder %s260, %s261
      %p275 = scmp.eq.s32.totalorder %s24, 1
      %p276 = por %p274, %p275
      %p278 = scmp.ne.s32.totalorder %s261, %s277
      %p279 = scmp.eq.s32.totalorder %s24, 0
      %p280 = por %p278, %p279
      %p281 = scmp.le.s32.totalorder 1, %s18
      %p282 = scmp.lt.s32.totalorder %s18, 3
      %p283 = pnand %p281, %p282
      %p284 = pneg %p283
      // Predicated region
      $region9: #{tpu_custom_call.1} parent=5 // pred_check
        _
      $region10: #{tpu_custom_call.1} parent=5 // pred_check_branch
        %286 = sbr.rel (%p283) target = $region12
      $region11: #{tpu_custom_call.1} parent=5 // pred_region
        %s287 = ssub.s32 %s18, 1
        // Predicated region
        $region13: #{tpu_custom_call.1} parent=11 // pred_check
          %p288 = pneg %p107
        $region14: #{tpu_custom_call.1} parent=11 // pred_check_branch
          %290 = sbr.rel (%p288) target = $region16
        $region15: #{tpu_custom_call.1} parent=11 // pred_region
          _
        $region16: #{tpu_custom_call.1} parent=11 // pred_fallthru
          _
        // Predicated region
        $region17: #{tpu_custom_call.1} parent=11 // pred_check
          %p291 = pneg %p128
        $region18: #{tpu_custom_call.1} parent=11 // pred_check_branch
          %293 = sbr.rel (%p291) target = $region20
        $region19: #{tpu_custom_call.1} parent=11 // pred_region
          _
        $region20: #{tpu_custom_call.1} parent=11 // pred_fallthru
          _
        // Predicated region
        $region21: #{tpu_custom_call.1} parent=11 // pred_check
          %p294 = pneg %p149
        $region22: #{tpu_custom_call.1} parent=11 // pred_check_branch
          %296 = sbr.rel (%p294) target = $region24
        $region23: #{tpu_custom_call.1} parent=11 // pred_region
          _
        $region24: #{tpu_custom_call.1} parent=11 // pred_fallthru
          _
        // Predicated region
        $region25: #{tpu_custom_call.1} parent=11 // pred_check
          %p297 = pneg %p170
        $region26: #{tpu_custom_call.1} parent=11 // pred_check_branch
          %299 = sbr.rel (%p297) target = $region28
        $region27: #{tpu_custom_call.1} parent=11 // pred_region
          _
        $region28: #{tpu_custom_call.1} parent=11 // pred_fallthru
          _
        // Predicated region
        $region29: #{tpu_custom_call.1} parent=11 // pred_check
          %p300 = pneg %p219
        $region30: #{tpu_custom_call.1} parent=11 // pred_check_branch
          %302 = sbr.rel (%p300) target = $region32
        $region31: #{tpu_custom_call.1} parent=11 // pred_region
          _
        $region32: #{tpu_custom_call.1} parent=11 // pred_fallthru
          _
        // Predicated region
        $region33: #{tpu_custom_call.1} parent=11 // pred_check
          %p303 = pneg %p245
        $region34: #{tpu_custom_call.1} parent=11 // pred_check_branch
          %305 = sbr.rel (%p303) target = $region36
        $region35: #{tpu_custom_call.1} parent=11 // pred_region
          %p306 = scmp.lt.s32.totalorder %s28, 0
          %s307 = scalar_select %p306, %s28, 0
          %s308 = smul.addr %s307, 8
          %s309 = scalar_lea.vmem %s8, %s308
        $region36: #{tpu_custom_call.1} parent=11 // pred_fallthru
          _
      $region12: #{tpu_custom_call.1} parent=5 // pred_fallthru
        _
      %p310 = scmp.lt.s32.totalorder %s18, 2
      // Predicated region
      $region37: #{tpu_custom_call.1} parent=5 // pred_check
        %p311 = pneg %p310
      $region38: #{tpu_custom_call.1} parent=5 // pred_check_branch
        %313 = sbr.rel (%p311) target = $region40
      $region39: #{tpu_custom_call.1} parent=5 // pred_region
        // Predicated region
        $region41: #{tpu_custom_call.1} parent=39 // pred_check
          %p314 = pneg %p52
        $region42: #{tpu_custom_call.1} parent=39 // pred_check_branch
          %316 = sbr.rel (%p314) target = $region44
        $region43: #{tpu_custom_call.1} parent=39 // pred_region
          %p317 = scmp.lt.s32.totalorder %s25, 1
          %s318 = scalar_select %p317, %s25, 1
          %p319 = scmp.lt.s32.totalorder %s26, 0
          %s320 = scalar_select %p319, %s26, 0
          %s321 = smul.addr %s320, 3
          %s322 = smul.addr %s318, 3
          %s323 = sadd.s32 %s321, %s322
          %s324 = smul.addr %s323, 4
          %s325 = scalar_lea.vmem %s0, %s324
        $region44: #{tpu_custom_call.1} parent=39 // pred_fallthru
          _
        // Predicated region
        $region45: #{tpu_custom_call.1} parent=39 // pred_check
          %p326 = pneg %p80
        $region46: #{tpu_custom_call.1} parent=39 // pred_check_branch
          %328 = sbr.rel (%p326) target = $region48
        $region47: #{tpu_custom_call.1} parent=39 // pred_region
          %p329 = scmp.lt.s32.totalorder %s25, 1
          %s330 = scalar_select %p329, %s25, 1
          %p331 = scmp.lt.s32.totalorder %s26, 0
          %s332 = scalar_select %p331, %s26, 0
          %s333 = sadd.s32 %s332, %s330
          %s334 = smul.addr %s333, 4
          %s335 = scalar_lea.vmem %s1, %s334
        $region48: #{tpu_custom_call.1} parent=39 // pred_fallthru
          _
        // Predicated region
        $region49: #{tpu_custom_call.1} parent=39 // pred_check
          %p336 = pneg %p192
        $region50: #{tpu_custom_call.1} parent=39 // pred_check_branch
          %338 = sbr.rel (%p336) target = $region52
        $region51: #{tpu_custom_call.1} parent=39 // pred_region
          %p339 = scmp.lt.s32.totalorder %s25, 1
          %s340 = scalar_select %p339, %s25, 1
          %p341 = scmp.lt.s32.totalorder %s26, 0
          %s342 = scalar_select %p341, %s26, 0
          %s343 = sadd.s32 %s342, %s340
          %s344 = smul.addr %s343, 8
          %s345 = scalar_lea.vmem %s6, %s344
        $region52: #{tpu_custom_call.1} parent=39 // pred_fallthru
          _
      $region40: #{tpu_custom_call.1} parent=5 // pred_fallthru
        _
      %p346 = scmp.le.s32.totalorder 1, %s18
      %p347 = scmp.lt.s32.totalorder %s18, 3
      %p348 = pnand %p346, %p347
      %p349 = pneg %p348
      // Predicated region
      $region53: #{tpu_custom_call.1} parent=5 // pred_check
        _
      $region54: #{tpu_custom_call.1} parent=5 // pred_check_branch
        %351 = sbr.rel (%p348) target = $region56
      $region55: #{tpu_custom_call.1} parent=5 // pred_region
        %s352 = ssub.s32 %s18, 1
        %p353 = scmp.lt.s32.totalorder %s27, 1
        %s354 = scalar_select %p353, %s27, 1
        %p355 = scmp.lt.s32.totalorder %s28, 0
        %s356 = scalar_select %p355, %s28, 0
        %s357 = smul.addr %s356, 3
        %s358 = smul.addr %s354, 3
        %s359 = sadd.s32 %s357, %s358
        %s360 = smul.addr %s359, 4
        %s361 = scalar_lea.vmem %s0, %s360
        %p362 = pneg %p58
        %p363 = pneg %p55
        %p364 = scmp.lt.s32.totalorder %s27, 1
        %s365 = scalar_select %p364, %s27, 1
        %p366 = scmp.lt.s32.totalorder %s28, 0
        %s367 = scalar_select %p366, %s28, 0
        %s368 = sadd.s32 %s367, %s365
        %s369 = smul.addr %s368, 4
        %s370 = scalar_lea.vmem %s1, %s369
        %p371 = pneg %p86
        %p372 = pneg %p83
        %p373 = pneg %p107
        %p374 = pneg %p104
        %p375 = pneg %p128
        %p376 = pneg %p125
        %p377 = pneg %p149
        %p378 = pneg %p146
        %p379 = pneg %p170
        %p380 = pneg %p167
        %p381 = scmp.lt.s32.totalorder %s27, 1
        %s382 = scalar_select %p381, %s27, 1
        %p383 = scmp.lt.s32.totalorder %s28, 0
        %s384 = scalar_select %p383, %s28, 0
        %s385 = sadd.s32 %s384, %s382
        %s386 = smul.addr %s385, 8
        %s387 = scalar_lea.vmem %s6, %s386
        %p388 = pneg %p198
        %p389 = pneg %p195
        %p390 = pneg %p219
        %p391 = pneg %p216
        %p392 = scmp.lt.s32.totalorder %s28, 0
        %s393 = scalar_select %p392, %s28, 0
        %s394 = smul.addr %s393, 8
        %s395 = scalar_lea.vmem %s8, %s394
        %p396 = pneg %p245
        %p397 = pneg %p242
        %p398 = pneg %p273
        %p399 = pneg %p270
        %s400 = sand.u32 %s260, 1
        %s401 = scalar_lea.sflag [#allocation3], %s400
        %s402 = sand.u32 %s260, 1
        %s403 = smul.addr %s402, 4
        %s404 = scalar_lea.vmem [#allocation2], %s403
        %p405 = scmp.lt.s32.totalorder %s27, 1
        %s406 = scalar_select %p405, %s27, 1
        %p407 = scmp.lt.s32.totalorder %s28, 0
        %s408 = scalar_select %p407, %s28, 0
        %s409 = smul.addr %s408, 3
        %s410 = smul.addr %s406, 3
        %s411 = sadd.s32 %s409, %s410
        %s412 = smul.addr %s411, 4
        %s413 = scalar_lea.vmem %s0, %s412
        %p414 = scmp.lt.s32.totalorder %s27, 1
        %s415 = scalar_select %p414, %s27, 1
        %p416 = scmp.lt.s32.totalorder %s28, 0
        %s417 = scalar_select %p416, %s28, 0
        %s418 = sadd.s32 %s417, %s415
        %s419 = smul.addr %s418, 4
        %s420 = scalar_lea.vmem %s1, %s419
        %p421 = scmp.lt.s32.totalorder %s27, 1
        %s422 = scalar_select %p421, %s27, 1
        %p423 = scmp.lt.s32.totalorder %s28, 0
        %s424 = scalar_select %p423, %s28, 0
        %s425 = sadd.s32 %s424, %s422
        %s426 = smul.addr %s425, 8
        %s427 = scalar_lea.vmem %s6, %s426
        %p428 = scmp.lt.s32.totalorder %s28, 0
        %s429 = scalar_select %p428, %s28, 0
        %s430 = smul.addr %s429, 8
        %s431 = scalar_lea.vmem %s8, %s430
        %v432 = vld [vmem:[%s413] sm:$0xff]
        %v433 = vld [vmem:[%s413 + $0x8] sm:$0xf]
        %v434 = vld [vmem:[%s2] sm:$0xf]
        %v435 = vld [vmem:[%s2 + $0x4] sm:$0xf]
        %v436 = vld [vmem:[%s2 + $0x8] sm:$0xf]
        %v437 = vld [vmem:[%s2 + $0xc] sm:$0xf]
        %v438 = vld [vmem:[%s2 + $0x10] sm:$0xf]
        %v439 = vld [vmem:[%s2 + $0x14] sm:$0xf]
        %v440 = vld [vmem:[%s2 + $0x18] sm:$0xf]
        %v441 = vld [vmem:[%s2 + $0x1c] sm:$0xf]
        %v442 = vld [vmem:[%s2 + $0x20] sm:$0xf]
        %v443 = vld [vmem:[%s2 + $0x24] sm:$0xf]
        %v444 = vld [vmem:[%s2 + $0x28] sm:$0xf]
        %v445 = vld [vmem:[%s2 + $0x2c] sm:$0xf]
        %v446 = vld [vmem:[%s2 + $0x30] sm:$0xf]
        %v447 = vld [vmem:[%s2 + $0x34] sm:$0xf]
        %v448 = vld [vmem:[%s2 + $0x38] sm:$0xf]
        %v449 = vld [vmem:[%s2 + $0x3c] sm:$0xf]
        %v450 = vld [vmem:[%s2 + $0x40] sm:$0xf]
        %v451 = vld [vmem:[%s2 + $0x44] sm:$0xf]
        %v452 = vld [vmem:[%s2 + $0x48] sm:$0xf]
        %v453 = vld [vmem:[%s2 + $0x4c] sm:$0xf]
        %v454 = vld [vmem:[%s2 + $0x50] sm:$0xf]
        %v455 = vld [vmem:[%s2 + $0x54] sm:$0xf]
        %v456 = vld [vmem:[%s2 + $0x58] sm:$0xf]
        %v457 = vld [vmem:[%s2 + $0x5c] sm:$0xf]
        %v458 = vld [vmem:[%s2 + $0x60] sm:$0xf]
        %v459 = vld [vmem:[%s2 + $0x64] sm:$0xf]
        %v460 = vld [vmem:[%s2 + $0x68] sm:$0xf]
        %v461 = vld [vmem:[%s2 + $0x6c] sm:$0xf]
        %v462 = vld [vmem:[%s2 + $0x70] sm:$0xf]
        %v463 = vld [vmem:[%s2 + $0x74] sm:$0xf]
        %v464 = vld [vmem:[%s2 + $0x78] sm:$0xf]
        %v465 = vld [vmem:[%s2 + $0x7c] sm:$0xf]
        %v466 = vld [vmem:[%s2 + $0x80] sm:$0xf]
        %v467 = vld [vmem:[%s2 + $0x84] sm:$0xf]
        %v468 = vld [vmem:[%s2 + $0x88] sm:$0xf]
        %v469 = vld [vmem:[%s2 + $0x8c] sm:$0xf]
        %v470 = vld [vmem:[%s2 + $0x90] sm:$0xf]
        %v471 = vld [vmem:[%s2 + $0x94] sm:$0xf]
        %v472 = vld [vmem:[%s2 + $0x98] sm:$0xf]
        %v473 = vld [vmem:[%s2 + $0x9c] sm:$0xf]
        %v474 = vld [vmem:[%s2 + $0xa0] sm:$0xf]
        %v475 = vld [vmem:[%s2 + $0xa4] sm:$0xf]
        %v476 = vld [vmem:[%s2 + $0xa8] sm:$0xf]
        %v477 = vld [vmem:[%s2 + $0xac] sm:$0xf]
        %v478 = vld [vmem:[%s2 + $0xb0] sm:$0xf]
        %v479 = vld [vmem:[%s2 + $0xb4] sm:$0xf]
        %v480 = vld [vmem:[%s2 + $0xb8] sm:$0xf]
        %v481 = vld [vmem:[%s2 + $0xbc] sm:$0xf]
        %v482 = vld [vmem:[%s3] sm:$0x1]
        %v484 = vperm.slane %v482, 0
        %v488 = vunpack.c.l.b16 %v432
        %v489 = vunpack.c.h.b16 %v432
        %v490 = vunpack.c.l.b16 %v433
        %v491 = vpack.c.b16 %v488, %v488
        %v492 = vpack.c.b16 %v489, %v489
        %v493 = vpack.c.b16 %v490, %v490
        %v545 = vunpack.c.l.b16 %v434
        %v546 = vunpack.c.l.b16 %v435
        %v547 = vunpack.c.l.b16 %v436
        %v548 = vunpack.c.l.b16 %v437
        %v549 = vunpack.c.l.b16 %v438
        %v550 = vunpack.c.l.b16 %v439
        %v551 = vunpack.c.l.b16 %v440
        %v552 = vunpack.c.l.b16 %v441
        %v553 = vunpack.c.l.b16 %v442
        %v554 = vunpack.c.l.b16 %v443
        %v555 = vunpack.c.l.b16 %v444
        %v556 = vunpack.c.l.b16 %v445
        %v557 = vunpack.c.l.b16 %v446
        %v558 = vunpack.c.l.b16 %v447
        %v559 = vunpack.c.l.b16 %v448
        %v560 = vunpack.c.l.b16 %v449
        %v561 = vunpack.c.l.b16 %v450
        %v562 = vunpack.c.l.b16 %v451
        %v563 = vunpack.c.l.b16 %v452
        %v564 = vunpack.c.l.b16 %v453
        %v565 = vunpack.c.l.b16 %v454
        %v566 = vunpack.c.l.b16 %v455
        %v567 = vunpack.c.l.b16 %v456
        %v568 = vunpack.c.l.b16 %v457
        %v569 = vunpack.c.l.b16 %v458
        %v570 = vunpack.c.l.b16 %v459
        %v571 = vunpack.c.l.b16 %v460
        %v572 = vunpack.c.l.b16 %v461
        %v573 = vunpack.c.l.b16 %v462
        %v574 = vunpack.c.l.b16 %v463
        %v575 = vunpack.c.l.b16 %v464
        %v576 = vunpack.c.l.b16 %v465
        %v577 = vunpack.c.l.b16 %v466
        %v578 = vunpack.c.l.b16 %v467
        %v579 = vunpack.c.l.b16 %v468
        %v580 = vunpack.c.l.b16 %v469
        %v581 = vunpack.c.l.b16 %v470
        %v582 = vunpack.c.l.b16 %v471
        %v583 = vunpack.c.l.b16 %v472
        %v584 = vunpack.c.l.b16 %v473
        %v585 = vunpack.c.l.b16 %v474
        %v586 = vunpack.c.l.b16 %v475
        %v587 = vunpack.c.l.b16 %v476
        %v588 = vunpack.c.l.b16 %v477
        %v589 = vunpack.c.l.b16 %v478
        %v590 = vunpack.c.l.b16 %v479
        %v591 = vunpack.c.l.b16 %v480
        %v592 = vunpack.c.l.b16 %v481
        %v593 = vpack.c.b16 %v546, %v545
        %v594 = vpack.c.b16 %v548, %v547
        %v595 = vpack.c.b16 %v550, %v549
        %v596 = vpack.c.b16 %v552, %v551
        %v597 = vpack.c.b16 %v554, %v553
        %v598 = vpack.c.b16 %v556, %v555
        %v599 = vpack.c.b16 %v558, %v557
        %v600 = vpack.c.b16 %v560, %v559
        %v601 = vpack.c.b16 %v562, %v561
        %v602 = vpack.c.b16 %v564, %v563
        %v603 = vpack.c.b16 %v566, %v565
        %v604 = vpack.c.b16 %v568, %v567
        %v605 = vpack.c.b16 %v570, %v569
        %v606 = vpack.c.b16 %v572, %v571
        %v607 = vpack.c.b16 %v574, %v573
        %v608 = vpack.c.b16 %v576, %v575
        %v609 = vpack.c.b16 %v578, %v577
        %v610 = vpack.c.b16 %v580, %v579
        %v611 = vpack.c.b16 %v582, %v581
        %v612 = vpack.c.b16 %v584, %v583
        %v613 = vpack.c.b16 %v586, %v585
        %v614 = vpack.c.b16 %v588, %v587
        %v615 = vpack.c.b16 %v590, %v589
        %v616 = vpack.c.b16 %v592, %v591
        %641 = vmatpush.bf16.msra.mxu0 %v600
        %642 = vmatpush.bf16.msra.mxu0 %v599
        %643 = vmatpush.bf16.msra.mxu0 %v598
        %644 = vmatpush.bf16.msra.mxu0 %v597
        %645 = vmatpush.bf16.msra.mxu0 %v596
        %646 = vmatpush.bf16.msra.mxu0 %v595
        %647 = vmatpush.bf16.msra.mxu0 %v594
        %648 = vmatpush.bf16.msra.mxu0 %v593
        %649 = vmatmul.bf16.gmra.mxu0 %v491
        %v650 = vpop.f32.mrf.mxu0
        %v651 = vadd.f32 %v484, %v650
        %v652 = vpop.f32.mrf.mxu0
        %653 = vdwg.mxu0
        %654 = vmatpush.bf16.msra.mxu0 %v608
        %655 = vmatpush.bf16.msra.mxu0 %v607
        %656 = vmatpush.bf16.msra.mxu0 %v606
        %657 = vmatpush.bf16.msra.mxu0 %v605
        %658 = vmatpush.bf16.msra.mxu0 %v604
        %659 = vmatpush.bf16.msra.mxu0 %v603
        %660 = vmatpush.bf16.msra.mxu0 %v602
        %661 = vmatpush.bf16.msra.mxu0 %v601
        %662 = vmatmul.bf16.gmra.mxu0 %v492
        %v663 = vpop.f32.mrf.mxu0
        %v664 = vadd.f32 %v651, %v663
        %v665 = vpop.f32.mrf.mxu0
        %666 = vdwg.mxu0
        %667 = vmatpush.bf16.msra.mxu0 %v616
        %668 = vmatpush.bf16.msra.mxu0 %v615
        %669 = vmatpush.bf16.msra.mxu0 %v614
        %670 = vmatpush.bf16.msra.mxu0 %v613
        %671 = vmatpush.bf16.msra.mxu0 %v612
        %672 = vmatpush.bf16.msra.mxu0 %v611
        %673 = vmatpush.bf16.msra.mxu0 %v610
        %674 = vmatpush.bf16.msra.mxu0 %v609
        %675 = vmatmul.bf16.gmra.mxu0 %v493
        %v676 = vpop.f32.mrf.mxu0
        %v677 = vadd.f32 %v664, %v676
        %v678 = vpop.f32.mrf.mxu0
        %679 = vdwg.mxu0
        %v680 = vld [vmem:[%s420] sm:$0xf]
        %v681 = vld [vmem:[%s4] sm:$0xf]
        %v682 = vld [vmem:[%s4 + $0x4] sm:$0xf]
        %v683 = vld [vmem:[%s4 + $0x8] sm:$0xf]
        %v684 = vld [vmem:[%s4 + $0xc] sm:$0xf]
        %v685 = vld [vmem:[%s4 + $0x10] sm:$0xf]
        %v686 = vld [vmem:[%s4 + $0x14] sm:$0xf]
        %v687 = vld [vmem:[%s4 + $0x18] sm:$0xf]
        %v688 = vld [vmem:[%s4 + $0x1c] sm:$0xf]
        %v689 = vld [vmem:[%s4 + $0x20] sm:$0xf]
        %v690 = vld [vmem:[%s4 + $0x24] sm:$0xf]
        %v691 = vld [vmem:[%s4 + $0x28] sm:$0xf]
        %v692 = vld [vmem:[%s4 + $0x2c] sm:$0xf]
        %v693 = vld [vmem:[%s4 + $0x30] sm:$0xf]
        %v694 = vld [vmem:[%s4 + $0x34] sm:$0xf]
        %v695 = vld [vmem:[%s4 + $0x38] sm:$0xf]
        %v696 = vld [vmem:[%s4 + $0x3c] sm:$0xf]
        %v697 = vld [vmem:[%s5] sm:$0x1]
        %v699 = vperm.slane %v697, 0
        %v717 = vunpack.c.l.b16 %v681
        %v718 = vunpack.c.l.b16 %v682
        %v719 = vunpack.c.l.b16 %v683
        %v720 = vunpack.c.l.b16 %v684
        %v721 = vunpack.c.l.b16 %v685
        %v722 = vunpack.c.l.b16 %v686
        %v723 = vunpack.c.l.b16 %v687
        %v724 = vunpack.c.l.b16 %v688
        %v725 = vunpack.c.l.b16 %v689
        %v726 = vunpack.c.l.b16 %v690
        %v727 = vunpack.c.l.b16 %v691
        %v728 = vunpack.c.l.b16 %v692
        %v729 = vunpack.c.l.b16 %v693
        %v730 = vunpack.c.l.b16 %v694
        %v731 = vunpack.c.l.b16 %v695
        %v732 = vunpack.c.l.b16 %v696
        %v733 = vpack.c.b16 %v718, %v717
        %v734 = vpack.c.b16 %v720, %v719
        %v735 = vpack.c.b16 %v722, %v721
        %v736 = vpack.c.b16 %v724, %v723
        %v737 = vpack.c.b16 %v726, %v725
        %v738 = vpack.c.b16 %v728, %v727
        %v739 = vpack.c.b16 %v730, %v729
        %v740 = vpack.c.b16 %v732, %v731
        %749 = vmatpush.bf16.msra.mxu0 %v740
        %750 = vmatpush.bf16.msra.mxu0 %v739
        %751 = vmatpush.bf16.msra.mxu0 %v738
        %752 = vmatpush.bf16.msra.mxu0 %v737
        %753 = vmatpush.bf16.msra.mxu0 %v736
        %754 = vmatpush.bf16.msra.mxu0 %v735
        %755 = vmatpush.bf16.msra.mxu0 %v734
        %756 = vmatpush.bf16.msra.mxu0 %v733
        %757 = vmatmul.bf16.gmra.mxu0 %v680
        %v758 = vpop.f32.mrf.mxu0
        %v759 = vadd.f32 %v699, %v758
        %v760 = vpop.f32.mrf.mxu0
        %761 = vdwg.mxu0
        %v762 = vadd.f32 %v677, %v759
        %v763 = vld [vmem:[%s427] sm:$0xff]
        %vm764 = vcmp.gt.f32.partialorder %v763, 0.5
        %v765 = vld [vmem:[%s7] sm:$0x1]
        %v766 = vsel %vm764, 1, 0
        %767 = vset.pattern.permute.xlu0 0
        %768 = vperm.xlu0 %767, %v766
        %v769 = vpop.permute.xlu0 %768
        %vm770 = vcmp.eq.s32.totalorder %v769, 1
        %v772 = vperm.slane %v765, 0
        %v774 = vsel %vm770, %v772, %v762
        %v775 = vld [vmem:[%s431] sm:$0xff]
        %v776 = vadd.f32 %v774, %v775
        %v777 = vpack.c.bf16 %v776, %v776
        %vm778 = vcmask 257024
        %779 = vst.msk [vmem:[%s404] sm:$0xf] %vm778, %v777
        %s780 = sand.u32 %s260, 1
        %s781 = scalar_lea.sflag [#allocation3], %s780
        %s782 = sand.u32 %s260, 1
        %s783 = smul.addr %s782, 4
        %s784 = scalar_lea.vmem [#allocation2], %s783
        // Predicated region
        $region57: #{tpu_custom_call.1} parent=55 // pred_check
          %p785 = pneg %p270
        $region58: #{tpu_custom_call.1} parent=55 // pred_check_branch
          %787 = sbr.rel (%p785) target = $region60
        $region59: #{tpu_custom_call.1} parent=55 // pred_region
          %789 = vsyncadd %s781, 0
          %s790 = sadd.s32 %s28, %s27
          %s791 = smul.addr %s790, 4
          %s792 = scalar_lea.hbm %s9, %s791
          %s794 = sshll.u32 %s784, 4
          %s795 = int_to_ptr.vmem [resolvable:$true] %s794
          %s796 = sshll.u32 %s792, 4
          %s797 = int_to_ptr.hbm [resolvable:$true] %s796
          %799 = dma.vmem_to_hbm [thread:$0]  %s795, 64, %s797, %s781
        $region60: #{tpu_custom_call.1} parent=55 // pred_fallthru
          _
      $region56: #{tpu_custom_call.1} parent=5 // pred_fallthru
        _
      %p800 = scmp.le.s32.totalorder 2, %s18
      // Predicated region
      $region61: #{tpu_custom_call.1} parent=5 // pred_check
        %p801 = pneg %p800
      $region62: #{tpu_custom_call.1} parent=5 // pred_check_branch
        %803 = sbr.rel (%p801) target = $region64
      $region63: #{tpu_custom_call.1} parent=5 // pred_region
        %s804 = ssub.s32 %s18, 2
        // Predicated region
        $region65: #{tpu_custom_call.1} parent=63 // pred_check
          %p805 = pneg %p276
        $region66: #{tpu_custom_call.1} parent=63 // pred_check_branch
          %807 = sbr.rel (%p805) target = $region68
        $region67: #{tpu_custom_call.1} parent=63 // pred_region
          %s808 = sand.u32 %s261, 1
          %s809 = scalar_lea.sflag [#allocation3], %s808
          %s810 = sand.u32 %s261, 1
          %s811 = smul.addr %s810, 4
          %s812 = scalar_lea.vmem [#allocation2], %s811
          %814 = dma.done %s809, 64
        $region68: #{tpu_custom_call.1} parent=63 // pred_fallthru
          _
      $region64: #{tpu_custom_call.1} parent=5 // pred_fallthru
        _
    $region6: #{tpu_custom_call.1} parent=1 // loop_footer
      %s22 = sadd.s32 1, %s18
    $region7: #{tpu_custom_call.1} parent=1 // loop_footer_branch
      %17 = sbr.rel target = $region3
    $region8: #{tpu_custom_call.1} parent=1 // loop_exit
      _
    %815 = vsyncpa [#allocation3], 1
    %s816 = scalar_lea.sflag [#allocation3], 1
    %817 = vsyncpa %s816, 1

</llo_original>
